<compile_context>
chip_gen: v7x
topology: tpu7x:2x2x1
jax: 0.10.0
libtpu: 0.0.40
codegen_flags: <defaults>
</compile_context>

<pallas_src>
import jax
import jax.numpy as jnp
from jax.experimental import pallas as pl
from jax.experimental.pallas import tpu as pltpu

LN_EPS = 1e-5  # PyTorch nn.LayerNorm default


def _round_up(x: int, m: int) -> int:
    return ((x + m - 1) // m) * m


def _cdiv(a: int, b: int) -> int:
    return -(-a // b)


def _make_act_kernel(num_layers: int, d_in: int, d_pad: int, unroll_max: int = 8):
    """Fused ActLayer kernel for a fixed (static) number of hidden layers.

    d_in  : true feature width (LayerNorm divisor)
    d_pad : lane-padded feature width used for weights / activations
    """
    inv_d = 1.0 / float(d_in)

    def one_layer(h_bf16, w, vecs):
        b, g, beta = vecs[0:1, :], vecs[1:2, :], vecs[2:3, :]
        # Linear: bf16 MXU operands, f32 accumulation. Padded weight columns
        # are zero and padded bias lanes are zero -> padded lanes of z are 0.
        z = jnp.dot(h_bf16, w, preferred_element_type=jnp.float32) + b
        # Single-pass LayerNorm over the TRUE feature width (padded lanes
        # contribute 0 to both sums, divisor is d_in -> exact statistics).
        s1 = jnp.sum(z, axis=-1, keepdims=True)
        s2 = jnp.sum(z * z, axis=-1, keepdims=True)
        mean = s1 * inv_d
        var = jnp.maximum(s2 * inv_d - mean * mean, 0.0)
        h = (z - mean) * jax.lax.rsqrt(var + LN_EPS)
        h = h * g + beta            # padded lanes: g = beta = 0 -> back to 0
        return jnp.maximum(h, 0.0)  # ReLU (padded lanes stay 0)

    def kernel(x_ref, w_ref, v_ref, wout_ref, bout_ref, out_ref):
        # Layer 0: input has the true width d_in, so use only the first d_in
        # rows of the (zero-padded) layer-0 weight.
        w0 = w_ref[0, :d_in, :] if d_in != d_pad else w_ref[0]
        h = one_layer(x_ref[...], w0, v_ref[0])          # x_ref is bf16 already

        if num_layers <= unroll_max:
            for l in range(1, num_layers):
                h = one_layer(h.astype(jnp.bfloat16), w_ref[l], v_ref[l])
        else:
            def body(l, hc):
                return one_layer(hc.astype(jnp.bfloat16), w_ref[l], v_ref[l])
            h = jax.lax.fori_loop(1, num_layers, body, h)

        out = jnp.dot(h.astype(jnp.bfloat16), wout_ref[...],
                      preferred_element_type=jnp.float32) + bout_ref[...]
        out_ref[...] = out.astype(out_ref.dtype)          # (TB, A_pad) lane-dense

    return kernel


def pack_params(hidden_params, out_params, *, pad_to: int = 128):
    """One-time conversion from PyTorch (out, in) convention to kernel layout.

    Returns a dict with:
      w_stack: (L, D_pad, D_pad) bf16, (in, out) layout, zero-padded
      v_stack: (L, 3, D_pad)     f32  -> [bias, ln_weight, ln_bias], zero-padded
      w_out:   (D_pad, A_pad)    bf16 (zero-padded rows/columns)
      b_out:   (1, A_pad)        f32  (zero-padded)
    """
    assert len(hidden_params) >= 1, "expect at least one hidden layer"
    D = hidden_params[0][0].shape[0]
    action_size = out_params[0].shape[0]
    D_pad = max(_round_up(D, pad_to), pad_to)
    A_pad = _round_up(action_size, 128)
    L = len(hidden_params)

    w_stack = jnp.zeros((L, D_pad, D_pad), jnp.bfloat16)
    v_stack = jnp.zeros((L, 3, D_pad), jnp.float32)
    for l, (w, b, g, beta) in enumerate(hidden_params):
        w_stack = w_stack.at[l, :D, :D].set(w.T.astype(jnp.bfloat16))
        v_stack = v_stack.at[l, 0, :D].set(b.astype(jnp.float32))
        v_stack = v_stack.at[l, 1, :D].set(g.astype(jnp.float32))
        v_stack = v_stack.at[l, 2, :D].set(beta.astype(jnp.float32))

    w_out, b_out = out_params
    w_out_p = jnp.zeros((D_pad, A_pad), jnp.bfloat16).at[:D, :action_size].set(
        w_out.T.astype(jnp.bfloat16))
    b_out_p = jnp.zeros((1, A_pad), jnp.float32).at[:, :action_size].set(
        b_out.astype(jnp.float32))

    return dict(w_stack=w_stack, v_stack=v_stack, w_out=w_out_p, b_out=b_out_p,
                action_size=action_size, input_size=D)


def act_layer_forward(x, packed, *, batch_tile=512, out_dtype=jnp.bfloat16):
    """x: (B, D) -> logits (B, action_size), float32."""
    w_stack = packed["w_stack"]
    v_stack = packed["v_stack"]
    w_out = packed["w_out"]
    b_out = packed["b_out"]
    action_size = packed["action_size"]
    D = packed["input_size"]

    L, D_pad, _ = w_stack.shape
    A_pad = w_out.shape[1]
    B = x.shape[0]
    assert x.shape[1] == D

    # Batch tile: multiple of 16 (bf16 sublane pack), capped by batch_tile.
    TB = min(_round_up(batch_tile, 16), _round_up(B, 16))
    # v7x megacore: when the batch is big enough, force >=2 grid steps so the
    # "parallel" axis shards across both TensorCores.
    if B >= 32 and _cdiv(B, TB) < 2:
        TB = _round_up(_cdiv(B, 2), 16)
    B_pad = _round_up(B, TB)

    # DMA x as bf16 (it is a bf16 MXU operand anyway) -> halves the x read.
    x = x.astype(jnp.bfloat16)
    if B_pad != B:
        x = jnp.pad(x, ((0, B_pad - B), (0, 0)))
    grid = (B_pad // TB,)

    # VMEM budget: single-buffered resident params + double-buffered IO tiles
    # + f32 working set; cap at ~0.85x of this generation's physical VMEM.
    param_bytes = (w_stack.size * 2 + v_stack.size * 4
                   + w_out.size * 2 + b_out.size * 4)
    io_bytes = TB * D * 2 + TB * A_pad * jnp.dtype(out_dtype).itemsize
    working = 8 * TB * max(D_pad, A_pad) * 4
    est = param_bytes + 2 * io_bytes + working
    try:
        vmem_cap = int(pltpu.get_tpu_info().vmem_capacity_bytes)
    except Exception:
        vmem_cap = 64 << 20   # conservative (v7x per-TC) fallback
    vmem_limit = int(min(max(2 * est, 16 << 20), int(0.85 * vmem_cap)))

    kernel = _make_act_kernel(L, D, D_pad)

    def _call(buffered_params: bool):
        # Resident parameters: constant index_map -> never re-fetched; with
        # Buffered(1) they are not double-buffered either (halves their VMEM).
        pm = {"pipeline_mode": pl.Buffered(1)} if buffered_params else {}
        in_specs = [
            pl.BlockSpec((TB, D), lambda i: (i, 0)),                 # x: batch-tiled
            pl.BlockSpec(w_stack.shape, lambda i: (0, 0, 0), **pm),  # weights
            pl.BlockSpec(v_stack.shape, lambda i: (0, 0, 0), **pm),  # bias/ln vecs
            pl.BlockSpec(w_out.shape, lambda i: (0, 0), **pm),       # out weight
            pl.BlockSpec(b_out.shape, lambda i: (0, 0), **pm),       # out bias
        ]
        return pl.pallas_call(
            kernel,
            out_shape=jax.ShapeDtypeStruct((B_pad, A_pad), out_dtype),
            grid=grid,
            in_specs=in_specs,
            out_specs=pl.BlockSpec((TB, A_pad), lambda i: (i, 0)),
            compiler_params=pltpu.CompilerParams(
                dimension_semantics=("parallel",),
                vmem_limit_bytes=vmem_limit,
            ),
        )(x, w_stack, v_stack, w_out, b_out)

    try:
        out = _call(True)
    except Exception:
        # Fallback: default double-buffering if Buffered(1) is rejected.
        out = _call(False)

    return out[:B, :action_size].astype(jnp.float32)


def init_params(key, input_size, num_layers, action_size):
    """Matches layer_init: orthogonal(gain=sqrt(2)) weights (out, in), zero
    biases; LayerNorm weight=1, bias=0. PyTorch convention."""
    gain = jnp.sqrt(2.0)  # nn.init.calculate_gain('relu')
    ortho = jax.nn.initializers.orthogonal(scale=gain)

    hidden_params = []
    keys = jax.random.split(key, num_layers + 1)
    for i in range(num_layers):
        w = ortho(keys[i], (input_size, input_size), jnp.float32)  # (out, in)
        b = jnp.zeros((input_size,), jnp.float32)
        g = jnp.ones((input_size,), jnp.float32)
        beta = jnp.zeros((input_size,), jnp.float32)
        hidden_params.append((w, b, g, beta))

    w_out = ortho(keys[-1], (action_size, input_size), jnp.float32)  # (out, in)
    b_out = jnp.zeros((action_size,), jnp.float32)
    return hidden_params, (w_out, b_out)


def reference_forward(x, hidden_params, out_params):
    """Pure-JAX f32 reference of the PyTorch module."""
    h = x.astype(jnp.float32)
    for (w, b, g, beta) in hidden_params:
        h = h @ w.T + b
        mean = jnp.mean(h, axis=-1, keepdims=True)
        var = jnp.mean((h - mean) ** 2, axis=-1, keepdims=True)
        h = (h - mean) / jnp.sqrt(var + LN_EPS)
        h = h * g + beta
        h = jnp.maximum(h, 0.0)
    w_out, b_out = out_params
    return h @ w_out.T + b_out


if __name__ == "__main__":
    input_size = 32
    num_layers = 2
    action_size = 12
    batch = 8

    key = jax.random.PRNGKey(0)
    k_x, k_p = jax.random.split(key)
    x = jax.random.normal(k_x, (batch, input_size), jnp.float32)

    hidden_params, out_params = init_params(k_p, input_size, num_layers, action_size)
    packed = pack_params(hidden_params, out_params)   # one-time layout/packing

    logits = act_layer_forward(x, packed)
    logits = jax.block_until_ready(logits)

    ref = reference_forward(x, hidden_params, out_params)
    assert logits.shape == (batch, action_size)
    # bf16 MXU operands / bf16 output store vs pure-f32 reference -> loose tol.
    assert jnp.allclose(logits, ref, atol=5e-2, rtol=5e-2), "mismatch vs reference"

    print("KERNEL_OK")
</pallas_src>

<mosaic_0001>
module attributes {stable_mosaic.version = 11 : i64} {
  func.func @kernel(%arg0: i32, %arg1: memref<16x32xbf16, #tpu.memory_space<vmem>>, %arg2: memref<2x128x128xbf16, #tpu.memory_space<vmem>>, %arg3: memref<2x3x128xf32, #tpu.memory_space<vmem>>, %arg4: memref<128x128xbf16, #tpu.memory_space<vmem>>, %arg5: memref<1x128xf32, #tpu.memory_space<vmem>>, %arg6: memref<16x128xbf16, #tpu.memory_space<vmem>>) attributes {dimension_semantics = [#tpu.dimension_semantics<parallel>], iteration_bounds = array<i64: 1>, scalar_prefetch = 0 : i64, scratch_operands = 0 : i64, tpu.core_type = #tpu.core_type<tc>, window_params = [{transform_indices = @transform_0, window_bounds = array<i64: 16, 32>}, {pipeline_mode = #tpu.pipeline_mode<synchronous>, transform_indices = @transform_1, window_bounds = array<i64: 2, 128, 128>}, {pipeline_mode = #tpu.pipeline_mode<synchronous>, transform_indices = @transform_2, window_bounds = array<i64: 2, 3, 128>}, {pipeline_mode = #tpu.pipeline_mode<synchronous>, transform_indices = @transform_3, window_bounds = array<i64: 128, 128>}, {pipeline_mode = #tpu.pipeline_mode<synchronous>, transform_indices = @transform_4, window_bounds = array<i64: 1, 128>}, {transform_indices = @transform_5, window_bounds = array<i64: 16, 128>}]} {
    %c0 = arith.constant 0 : index
    %c0_0 = arith.constant 0 : index
    %c0_1 = arith.constant 0 : index
    %0 = vector.load %arg2[%c0, %c0_0, %c0_1] : memref<2x128x128xbf16, #tpu.memory_space<vmem>>, vector<1x32x128xbf16>
    %1 = vector.shape_cast %0 : vector<1x32x128xbf16> to vector<32x128xbf16>
    %c0_2 = arith.constant 0 : index
    %c0_3 = arith.constant 0 : index
    %2 = vector.load %arg1[%c0_2, %c0_3] : memref<16x32xbf16, #tpu.memory_space<vmem>>, vector<16x32xbf16>
    %c0_4 = arith.constant 0 : index
    %c0_5 = arith.constant 0 : index
    %c0_6 = arith.constant 0 : index
    %3 = vector.load %arg3[%c0_4, %c0_5, %c0_6] : memref<2x3x128xf32, #tpu.memory_space<vmem>>, vector<1x3x128xf32>
    %4 = vector.shape_cast %3 : vector<1x3x128xf32> to vector<3x128xf32>
    %5 = vector.extract_strided_slice %4 {offsets = [0, 0], sizes = [1, 128], strides = [1, 1]} : vector<3x128xf32> to vector<1x128xf32>
    %6 = vector.extract_strided_slice %4 {offsets = [1, 0], sizes = [1, 128], strides = [1, 1]} : vector<3x128xf32> to vector<1x128xf32>
    %7 = vector.extract_strided_slice %4 {offsets = [2, 0], sizes = [1, 128], strides = [1, 1]} : vector<3x128xf32> to vector<1x128xf32>
    %cst = arith.constant dense<0.000000e+00> : vector<16x128xf32>
    %8 = tpu.matmul %2, %1, %cst {dimension_numbers = #tpu.dot_dimension_numbers<[1], [0], [0], [1], [0, 0, 1, 1], [], []>} : vector<16x32xbf16>, vector<32x128xbf16>, vector<16x128xf32> -> vector<16x128xf32>
    %9 = vector.broadcast %5 : vector<1x128xf32> to vector<16x128xf32>
    %10 = arith.addf %8, %9 : vector<16x128xf32>
    %cst_7 = arith.constant dense<0.000000e+00> : vector<16xf32>
    %11 = vector.multi_reduction <add>, %10, %cst_7 [1] : vector<16x128xf32> to vector<16xf32>
    %12 = vector.shape_cast %11 : vector<16xf32> to vector<16x1xf32>
    %13 = arith.mulf %10, %10 : vector<16x128xf32>
    %cst_8 = arith.constant dense<0.000000e+00> : vector<16xf32>
    %14 = vector.multi_reduction <add>, %13, %cst_8 [1] : vector<16x128xf32> to vector<16xf32>
    %15 = vector.shape_cast %14 : vector<16xf32> to vector<16x1xf32>
    %cst_9 = arith.constant 3.125000e-02 : f32
    %16 = vector.broadcast %cst_9 : f32 to vector<16x1xf32>
    %17 = arith.mulf %12, %16 : vector<16x1xf32>
    %cst_10 = arith.constant 3.125000e-02 : f32
    %18 = vector.broadcast %cst_10 : f32 to vector<16x1xf32>
    %19 = arith.mulf %15, %18 : vector<16x1xf32>
    %20 = arith.mulf %17, %17 : vector<16x1xf32>
    %21 = arith.subf %19, %20 : vector<16x1xf32>
    %cst_11 = arith.constant 0.000000e+00 : f32
    %22 = vector.broadcast %cst_11 : f32 to vector<16x1xf32>
    %23 = arith.maximumf %21, %22 : vector<16x1xf32>
    %24 = vector.broadcast %17 : vector<16x1xf32> to vector<16x128xf32>
    %25 = arith.subf %10, %24 : vector<16x128xf32>
    %cst_12 = arith.constant 9.99999974E-6 : f32
    %26 = vector.broadcast %cst_12 : f32 to vector<16x1xf32>
    %27 = arith.addf %23, %26 : vector<16x1xf32>
    %28 = math.rsqrt %27 : vector<16x1xf32>
    %29 = vector.broadcast %28 : vector<16x1xf32> to vector<16x128xf32>
    %30 = arith.mulf %25, %29 : vector<16x128xf32>
    %31 = vector.broadcast %6 : vector<1x128xf32> to vector<16x128xf32>
    %32 = arith.mulf %30, %31 : vector<16x128xf32>
    %33 = vector.broadcast %7 : vector<1x128xf32> to vector<16x128xf32>
    %34 = arith.addf %32, %33 : vector<16x128xf32>
    %cst_13 = arith.constant 0.000000e+00 : f32
    %35 = vector.broadcast %cst_13 : f32 to vector<16x128xf32>
    %36 = arith.maximumf %34, %35 : vector<16x128xf32>
    %37 = arith.truncf %36 : vector<16x128xf32> to vector<16x128xbf16>
    %c1 = arith.constant 1 : index
    %c0_14 = arith.constant 0 : index
    %c0_15 = arith.constant 0 : index
    %38 = vector.load %arg2[%c1, %c0_14, %c0_15] : memref<2x128x128xbf16, #tpu.memory_space<vmem>>, vector<1x128x128xbf16>
    %39 = vector.shape_cast %38 : vector<1x128x128xbf16> to vector<128x128xbf16>
    %c1_16 = arith.constant 1 : index
    %c0_17 = arith.constant 0 : index
    %c0_18 = arith.constant 0 : index
    %40 = vector.load %arg3[%c1_16, %c0_17, %c0_18] : memref<2x3x128xf32, #tpu.memory_space<vmem>>, vector<1x3x128xf32>
    %41 = vector.shape_cast %40 : vector<1x3x128xf32> to vector<3x128xf32>
    %42 = vector.extract_strided_slice %41 {offsets = [0, 0], sizes = [1, 128], strides = [1, 1]} : vector<3x128xf32> to vector<1x128xf32>
    %43 = vector.extract_strided_slice %41 {offsets = [1, 0], sizes = [1, 128], strides = [1, 1]} : vector<3x128xf32> to vector<1x128xf32>
    %44 = vector.extract_strided_slice %41 {offsets = [2, 0], sizes = [1, 128], strides = [1, 1]} : vector<3x128xf32> to vector<1x128xf32>
    %cst_19 = arith.constant dense<0.000000e+00> : vector<16x128xf32>
    %45 = tpu.matmul %37, %39, %cst_19 {dimension_numbers = #tpu.dot_dimension_numbers<[1], [0], [0], [1], [0, 0, 1, 1], [], []>} : vector<16x128xbf16>, vector<128x128xbf16>, vector<16x128xf32> -> vector<16x128xf32>
    %46 = vector.broadcast %42 : vector<1x128xf32> to vector<16x128xf32>
    %47 = arith.addf %45, %46 : vector<16x128xf32>
    %cst_20 = arith.constant dense<0.000000e+00> : vector<16xf32>
    %48 = vector.multi_reduction <add>, %47, %cst_20 [1] : vector<16x128xf32> to vector<16xf32>
    %49 = vector.shape_cast %48 : vector<16xf32> to vector<16x1xf32>
    %50 = arith.mulf %47, %47 : vector<16x128xf32>
    %cst_21 = arith.constant dense<0.000000e+00> : vector<16xf32>
    %51 = vector.multi_reduction <add>, %50, %cst_21 [1] : vector<16x128xf32> to vector<16xf32>
    %52 = vector.shape_cast %51 : vector<16xf32> to vector<16x1xf32>
    %cst_22 = arith.constant 3.125000e-02 : f32
    %53 = vector.broadcast %cst_22 : f32 to vector<16x1xf32>
    %54 = arith.mulf %49, %53 : vector<16x1xf32>
    %cst_23 = arith.constant 3.125000e-02 : f32
    %55 = vector.broadcast %cst_23 : f32 to vector<16x1xf32>
    %56 = arith.mulf %52, %55 : vector<16x1xf32>
    %57 = arith.mulf %54, %54 : vector<16x1xf32>
    %58 = arith.subf %56, %57 : vector<16x1xf32>
    %cst_24 = arith.constant 0.000000e+00 : f32
    %59 = vector.broadcast %cst_24 : f32 to vector<16x1xf32>
    %60 = arith.maximumf %58, %59 : vector<16x1xf32>
    %61 = vector.broadcast %54 : vector<16x1xf32> to vector<16x128xf32>
    %62 = arith.subf %47, %61 : vector<16x128xf32>
    %cst_25 = arith.constant 9.99999974E-6 : f32
    %63 = vector.broadcast %cst_25 : f32 to vector<16x1xf32>
    %64 = arith.addf %60, %63 : vector<16x1xf32>
    %65 = math.rsqrt %64 : vector<16x1xf32>
    %66 = vector.broadcast %65 : vector<16x1xf32> to vector<16x128xf32>
    %67 = arith.mulf %62, %66 : vector<16x128xf32>
    %68 = vector.broadcast %43 : vector<1x128xf32> to vector<16x128xf32>
    %69 = arith.mulf %67, %68 : vector<16x128xf32>
    %70 = vector.broadcast %44 : vector<1x128xf32> to vector<16x128xf32>
    %71 = arith.addf %69, %70 : vector<16x128xf32>
    %cst_26 = arith.constant 0.000000e+00 : f32
    %72 = vector.broadcast %cst_26 : f32 to vector<16x128xf32>
    %73 = arith.maximumf %71, %72 : vector<16x128xf32>
    %74 = arith.truncf %73 : vector<16x128xf32> to vector<16x128xbf16>
    %c0_27 = arith.constant 0 : index
    %c0_28 = arith.constant 0 : index
    %75 = vector.load %arg4[%c0_27, %c0_28] : memref<128x128xbf16, #tpu.memory_space<vmem>>, vector<128x128xbf16>
    %cst_29 = arith.constant dense<0.000000e+00> : vector<16x128xf32>
    %76 = tpu.matmul %74, %75, %cst_29 {dimension_numbers = #tpu.dot_dimension_numbers<[1], [0], [0], [1], [0, 0, 1, 1], [], []>} : vector<16x128xbf16>, vector<128x128xbf16>, vector<16x128xf32> -> vector<16x128xf32>
    %c0_30 = arith.constant 0 : index
    %c0_31 = arith.constant 0 : index
    %77 = vector.load %arg5[%c0_30, %c0_31] : memref<1x128xf32, #tpu.memory_space<vmem>>, vector<1x128xf32>
    %78 = vector.broadcast %77 : vector<1x128xf32> to vector<16x128xf32>
    %79 = arith.addf %76, %78 : vector<16x128xf32>
    %80 = arith.truncf %79 : vector<16x128xf32> to vector<16x128xbf16>
    %c0_32 = arith.constant 0 : index
    %c0_33 = arith.constant 0 : index
    %81 = vector.load %arg6[%c0_32, %c0_33] : memref<16x128xbf16, #tpu.memory_space<vmem>>, vector<16x128xbf16>
    tpu.vector_store %arg6[%c0_32, %c0_33], %80 {strides = array<i32>} : memref<16x128xbf16, #tpu.memory_space<vmem>>, vector<16x128xbf16>,
    return
  }
  func.func @transform_0(%arg0: i32) -> (i32, i32) {
    %c0_i32 = arith.constant 0 : i32
    %c0_i32_0 = arith.constant 0 : i32
    return %arg0, %c0_i32 : i32, i32
  }
  func.func @transform_1(%arg0: i32) -> (i32, i32, i32) {
    %c0_i32 = arith.constant 0 : i32
    %c0_i32_0 = arith.constant 0 : i32
    %c0_i32_1 = arith.constant 0 : i32
    %c0_i32_2 = arith.constant 0 : i32
    return %c0_i32, %c0_i32_0, %c0_i32_1 : i32, i32, i32
  }
  func.func @transform_2(%arg0: i32) -> (i32, i32, i32) {
    %c0_i32 = arith.constant 0 : i32
    %c0_i32_0 = arith.constant 0 : i32
    %c0_i32_1 = arith.constant 0 : i32
    %c0_i32_2 = arith.constant 0 : i32
    return %c0_i32, %c0_i32_0, %c0_i32_1 : i32, i32, i32
  }
  func.func @transform_3(%arg0: i32) -> (i32, i32) {
    %c0_i32 = arith.constant 0 : i32
    %c0_i32_0 = arith.constant 0 : i32
    %c0_i32_1 = arith.constant 0 : i32
    return %c0_i32, %c0_i32_0 : i32, i32
  }
  func.func @transform_4(%arg0: i32) -> (i32, i32) {
    %c0_i32 = arith.constant 0 : i32
    %c0_i32_0 = arith.constant 0 : i32
    %c0_i32_1 = arith.constant 0 : i32
    return %c0_i32, %c0_i32_0 : i32, i32
  }
  func.func @transform_5(%arg0: i32) -> (i32, i32) {
    %c0_i32 = arith.constant 0 : i32
    %c0_i32_0 = arith.constant 0 : i32
    return %arg0, %c0_i32 : i32, i32
  }
}

module attributes {stable_mosaic.version = 11 : i64} {
  func.func @kernel(%arg0: i32, %arg1: memref<16x32xbf16, #tpu.memory_space<vmem>>, %arg2: memref<2x128x128xbf16, #tpu.memory_space<vmem>>, %arg3: memref<2x3x128xf32, #tpu.memory_space<vmem>>, %arg4: memref<128x128xbf16, #tpu.memory_space<vmem>>, %arg5: memref<1x128xf32, #tpu.memory_space<vmem>>, %arg6: memref<16x128xbf16, #tpu.memory_space<vmem>>) attributes {dimension_semantics = [#tpu.dimension_semantics<parallel>], iteration_bounds = array<i64: 1>, scalar_prefetch = 0 : i64, scratch_operands = 0 : i64, tpu.core_type = #tpu.core_type<tc>, window_params = [{transform_indices = @transform_0, window_bounds = array<i64: 16, 32>}, {pipeline_mode = #tpu.pipeline_mode<synchronous>, transform_indices = @transform_1, window_bounds = array<i64: 2, 128, 128>}, {pipeline_mode = #tpu.pipeline_mode<synchronous>, transform_indices = @transform_2, window_bounds = array<i64: 2, 3, 128>}, {pipeline_mode = #tpu.pipeline_mode<synchronous>, transform_indices = @transform_3, window_bounds = array<i64: 128, 128>}, {pipeline_mode = #tpu.pipeline_mode<synchronous>, transform_indices = @transform_4, window_bounds = array<i64: 1, 128>}, {transform_indices = @transform_5, window_bounds = array<i64: 16, 128>}]} {
    %c0 = arith.constant 0 : index
    %c0_0 = arith.constant 0 : index
    %c0_1 = arith.constant 0 : index
    %0 = vector.load %arg2[%c0, %c0_0, %c0_1] : memref<2x128x128xbf16, #tpu.memory_space<vmem>>, vector<1x32x128xbf16>
    %1 = vector.shape_cast %0 : vector<1x32x128xbf16> to vector<32x128xbf16>
    %c0_2 = arith.constant 0 : index
    %c0_3 = arith.constant 0 : index
    %2 = vector.load %arg1[%c0_2, %c0_3] : memref<16x32xbf16, #tpu.memory_space<vmem>>, vector<16x32xbf16>
    %c0_4 = arith.constant 0 : index
    %c0_5 = arith.constant 0 : index
    %c0_6 = arith.constant 0 : index
    %3 = vector.load %arg3[%c0_4, %c0_5, %c0_6] : memref<2x3x128xf32, #tpu.memory_space<vmem>>, vector<1x3x128xf32>
    %4 = vector.shape_cast %3 : vector<1x3x128xf32> to vector<3x128xf32>
    %5 = vector.extract_strided_slice %4 {offsets = [0, 0], sizes = [1, 128], strides = [1, 1]} : vector<3x128xf32> to vector<1x128xf32>
    %6 = vector.extract_strided_slice %4 {offsets = [1, 0], sizes = [1, 128], strides = [1, 1]} : vector<3x128xf32> to vector<1x128xf32>
    %7 = vector.extract_strided_slice %4 {offsets = [2, 0], sizes = [1, 128], strides = [1, 1]} : vector<3x128xf32> to vector<1x128xf32>
    %cst = arith.constant dense<0.000000e+00> : vector<16x128xf32>
    %8 = tpu.matmul %2, %1, %cst {dimension_numbers = #tpu.dot_dimension_numbers<[1], [0], [0], [1], [0, 0, 1, 1], [], []>} : vector<16x32xbf16>, vector<32x128xbf16>, vector<16x128xf32> -> vector<16x128xf32>
    %9 = vector.broadcast %5 : vector<1x128xf32> to vector<16x128xf32>
    %10 = arith.addf %8, %9 : vector<16x128xf32>
    %cst_7 = arith.constant dense<0.000000e+00> : vector<16xf32>
    %11 = vector.multi_reduction <add>, %10, %cst_7 [1] : vector<16x128xf32> to vector<16xf32>
    %12 = vector.shape_cast %11 : vector<16xf32> to vector<16x1xf32>
    %13 = arith.mulf %10, %10 : vector<16x128xf32>
    %cst_8 = arith.constant dense<0.000000e+00> : vector<16xf32>
    %14 = vector.multi_reduction <add>, %13, %cst_8 [1] : vector<16x128xf32> to vector<16xf32>
    %15 = vector.shape_cast %14 : vector<16xf32> to vector<16x1xf32>
    %cst_9 = arith.constant 3.125000e-02 : f32
    %16 = vector.broadcast %cst_9 : f32 to vector<16x1xf32>
    %17 = arith.mulf %12, %16 : vector<16x1xf32>
    %cst_10 = arith.constant 3.125000e-02 : f32
    %18 = vector.broadcast %cst_10 : f32 to vector<16x1xf32>
    %19 = arith.mulf %15, %18 : vector<16x1xf32>
    %20 = arith.mulf %17, %17 : vector<16x1xf32>
    %21 = arith.subf %19, %20 : vector<16x1xf32>
    %cst_11 = arith.constant 0.000000e+00 : f32
    %22 = vector.broadcast %cst_11 : f32 to vector<16x1xf32>
    %23 = arith.maximumf %21, %22 : vector<16x1xf32>
    %24 = vector.broadcast %17 : vector<16x1xf32> to vector<16x128xf32>
    %25 = arith.subf %10, %24 : vector<16x128xf32>
    %cst_12 = arith.constant 9.99999974E-6 : f32
    %26 = vector.broadcast %cst_12 : f32 to vector<16x1xf32>
    %27 = arith.addf %23, %26 : vector<16x1xf32>
    %28 = math.rsqrt %27 : vector<16x1xf32>
    %29 = vector.broadcast %28 : vector<16x1xf32> to vector<16x128xf32>
    %30 = arith.mulf %25, %29 : vector<16x128xf32>
    %31 = vector.broadcast %6 : vector<1x128xf32> to vector<16x128xf32>
    %32 = arith.mulf %30, %31 : vector<16x128xf32>
    %33 = vector.broadcast %7 : vector<1x128xf32> to vector<16x128xf32>
    %34 = arith.addf %32, %33 : vector<16x128xf32>
    %cst_13 = arith.constant 0.000000e+00 : f32
    %35 = vector.broadcast %cst_13 : f32 to vector<16x128xf32>
    %36 = arith.maximumf %34, %35 : vector<16x128xf32>
    %37 = arith.truncf %36 : vector<16x128xf32> to vector<16x128xbf16>
    %c1 = arith.constant 1 : index
    %c0_14 = arith.constant 0 : index
    %c0_15 = arith.constant 0 : index
    %38 = vector.load %arg2[%c1, %c0_14, %c0_15] : memref<2x128x128xbf16, #tpu.memory_space<vmem>>, vector<1x128x128xbf16>
    %39 = vector.shape_cast %38 : vector<1x128x128xbf16> to vector<128x128xbf16>
    %c1_16 = arith.constant 1 : index
    %c0_17 = arith.constant 0 : index
    %c0_18 = arith.constant 0 : index
    %40 = vector.load %arg3[%c1_16, %c0_17, %c0_18] : memref<2x3x128xf32, #tpu.memory_space<vmem>>, vector<1x3x128xf32>
    %41 = vector.shape_cast %40 : vector<1x3x128xf32> to vector<3x128xf32>
    %42 = vector.extract_strided_slice %41 {offsets = [0, 0], sizes = [1, 128], strides = [1, 1]} : vector<3x128xf32> to vector<1x128xf32>
    %43 = vector.extract_strided_slice %41 {offsets = [1, 0], sizes = [1, 128], strides = [1, 1]} : vector<3x128xf32> to vector<1x128xf32>
    %44 = vector.extract_strided_slice %41 {offsets = [2, 0], sizes = [1, 128], strides = [1, 1]} : vector<3x128xf32> to vector<1x128xf32>
    %cst_19 = arith.constant dense<0.000000e+00> : vector<16x128xf32>
    %45 = tpu.matmul %37, %39, %cst_19 {dimension_numbers = #tpu.dot_dimension_numbers<[1], [0], [0], [1], [0, 0, 1, 1], [], []>} : vector<16x128xbf16>, vector<128x128xbf16>, vector<16x128xf32> -> vector<16x128xf32>
    %46 = vector.broadcast %42 : vector<1x128xf32> to vector<16x128xf32>
    %47 = arith.addf %45, %46 : vector<16x128xf32>
    %cst_20 = arith.constant dense<0.000000e+00> : vector<16xf32>
    %48 = vector.multi_reduction <add>, %47, %cst_20 [1] : vector<16x128xf32> to vector<16xf32>
    %49 = vector.shape_cast %48 : vector<16xf32> to vector<16x1xf32>
    %50 = arith.mulf %47, %47 : vector<16x128xf32>
    %cst_21 = arith.constant dense<0.000000e+00> : vector<16xf32>
    %51 = vector.multi_reduction <add>, %50, %cst_21 [1] : vector<16x128xf32> to vector<16xf32>
    %52 = vector.shape_cast %51 : vector<16xf32> to vector<16x1xf32>
    %cst_22 = arith.constant 3.125000e-02 : f32
    %53 = vector.broadcast %cst_22 : f32 to vector<16x1xf32>
    %54 = arith.mulf %49, %53 : vector<16x1xf32>
    %cst_23 = arith.constant 3.125000e-02 : f32
    %55 = vector.broadcast %cst_23 : f32 to vector<16x1xf32>
    %56 = arith.mulf %52, %55 : vector<16x1xf32>
    %57 = arith.mulf %54, %54 : vector<16x1xf32>
    %58 = arith.subf %56, %57 : vector<16x1xf32>
    %cst_24 = arith.constant 0.000000e+00 : f32
    %59 = vector.broadcast %cst_24 : f32 to vector<16x1xf32>
    %60 = arith.maximumf %58, %59 : vector<16x1xf32>
    %61 = vector.broadcast %54 : vector<16x1xf32> to vector<16x128xf32>
    %62 = arith.subf %47, %61 : vector<16x128xf32>
    %cst_25 = arith.constant 9.99999974E-6 : f32
    %63 = vector.broadcast %cst_25 : f32 to vector<16x1xf32>
    %64 = arith.addf %60, %63 : vector<16x1xf32>
    %65 = math.rsqrt %64 : vector<16x1xf32>
    %66 = vector.broadcast %65 : vector<16x1xf32> to vector<16x128xf32>
    %67 = arith.mulf %62, %66 : vector<16x128xf32>
    %68 = vector.broadcast %43 : vector<1x128xf32> to vector<16x128xf32>
    %69 = arith.mulf %67, %68 : vector<16x128xf32>
    %70 = vector.broadcast %44 : vector<1x128xf32> to vector<16x128xf32>
    %71 = arith.addf %69, %70 : vector<16x128xf32>
    %cst_26 = arith.constant 0.000000e+00 : f32
    %72 = vector.broadcast %cst_26 : f32 to vector<16x128xf32>
    %73 = arith.maximumf %71, %72 : vector<16x128xf32>
    %74 = arith.truncf %73 : vector<16x128xf32> to vector<16x128xbf16>
    %c0_27 = arith.constant 0 : index
    %c0_28 = arith.constant 0 : index
    %75 = vector.load %arg4[%c0_27, %c0_28] : memref<128x128xbf16, #tpu.memory_space<vmem>>, vector<128x128xbf16>
    %cst_29 = arith.constant dense<0.000000e+00> : vector<16x128xf32>
    %76 = tpu.matmul %74, %75, %cst_29 {dimension_numbers = #tpu.dot_dimension_numbers<[1], [0], [0], [1], [0, 0, 1, 1], [], []>} : vector<16x128xbf16>, vector<128x128xbf16>, vector<16x128xf32> -> vector<16x128xf32>
    %c0_30 = arith.constant 0 : index
    %c0_31 = arith.constant 0 : index
    %77 = vector.load %arg5[%c0_30, %c0_31] : memref<1x128xf32, #tpu.memory_space<vmem>>, vector<1x128xf32>
    %78 = vector.broadcast %77 : vector<1x128xf32> to vector<16x128xf32>
    %79 = arith.addf %76, %78 : vector<16x128xf32>
    %80 = arith.truncf %79 : vector<16x128xf32> to vector<16x128xbf16>
    %c0_32 = arith.constant 0 : index
    %c0_33 = arith.constant 0 : index
    %81 = vector.load %arg6[%c0_32, %c0_33] : memref<16x128xbf16, #tpu.memory_space<vmem>>, vector<16x128xbf16>
    tpu.vector_store %arg6[%c0_32, %c0_33], %80 {strides = array<i32>} : memref<16x128xbf16, #tpu.memory_space<vmem>>, vector<16x128xbf16>,
    return
  }
  func.func @transform_0(%arg0: i32) -> (i32, i32) {
    %c0_i32 = arith.constant 0 : i32
    %c0_i32_0 = arith.constant 0 : i32
    return %arg0, %c0_i32 : i32, i32
  }
  func.func @transform_1(%arg0: i32) -> (i32, i32, i32) {
    %c0_i32 = arith.constant 0 : i32
    %c0_i32_0 = arith.constant 0 : i32
    %c0_i32_1 = arith.constant 0 : i32
    %c0_i32_2 = arith.constant 0 : i32
    return %c0_i32, %c0_i32_0, %c0_i32_1 : i32, i32, i32
  }
  func.func @transform_2(%arg0: i32) -> (i32, i32, i32) {
    %c0_i32 = arith.constant 0 : i32
    %c0_i32_0 = arith.constant 0 : i32
    %c0_i32_1 = arith.constant 0 : i32
    %c0_i32_2 = arith.constant 0 : i32
    return %c0_i32, %c0_i32_0, %c0_i32_1 : i32, i32, i32
  }
  func.func @transform_3(%arg0: i32) -> (i32, i32) {
    %c0_i32 = arith.constant 0 : i32
    %c0_i32_0 = arith.constant 0 : i32
    %c0_i32_1 = arith.constant 0 : i32
    return %c0_i32, %c0_i32_0 : i32, i32
  }
  func.func @transform_4(%arg0: i32) -> (i32, i32) {
    %c0_i32 = arith.constant 0 : i32
    %c0_i32_0 = arith.constant 0 : i32
    %c0_i32_1 = arith.constant 0 : i32
    return %c0_i32, %c0_i32_0 : i32, i32
  }
  func.func @transform_5(%arg0: i32) -> (i32, i32) {
    %c0_i32 = arith.constant 0 : i32
    %c0_i32_0 = arith.constant 0 : i32
    return %arg0, %c0_i32 : i32, i32
  }
}

</mosaic_0001>

<llo_original>
// kernel: tpu_custom_call.1
$region0: #{tpu_custom_call.1}
  #allocation0 [shape = 'u32[]', space=smem, size = 0x4, offset = 0x4, fixed_abs, tag = 'smem constant byte address 0x4 - core index']
  #allocation1 [shape = 'u32[144,128]{1,0:T(1,128)}', space=vmem, size = 0x12000, scoped, tag = 'internal scratch']
  %s0 = inlined_call_operand.vmem [shape: bf16[16,32], index: 0, kind: input, shape index: {}]
  %s1 = inlined_call_operand.hbm [shape: bf16[2,128,128], index: 1, kind: input, shape index: {}]
  %s2 = inlined_call_operand.vmem [shape: f32[2,3,128], index: 2, kind: input, shape index: {}]
  %s3 = inlined_call_operand.hbm [shape: bf16[128,128], index: 3, kind: input, shape index: {}]
  %s4 = inlined_call_operand.vmem [shape: f32[1,128], index: 4, kind: input, shape index: {}]
  %s5 = inlined_call_operand.hbm [shape: bf16[16,128], index: 5, kind: output, shape index: {}]
  %s6 = sld [smem:[#allocation0]]
  $region38: #{tpu_custom_call.1} parent=0
    _
  %s8 = ssub.s32 1, %s6
  %s9 = scalar_select 0, %s8, %s6
  $region1: #{tpu_custom_call.1} parent=0
    #allocation2 [shape = 'u8[65536]{0}', space=vmem, size = 0x10000, scoped, tag = 'input window, operand 1, single buffered']
    #allocation3 [shape = 's32[1]{0}', space=sflag, size = 0x4, scoped, tag = 'scoped memory for tpu_custom_call.1']
    #allocation4 [shape = 's32[1]{0}', space=sflag, size = 0x4, scoped, tag = 'scoped memory for tpu_custom_call.1']
    #allocation5 [shape = 'u8[32768]{0}', space=vmem, size = 0x8000, scoped, tag = 'input window, operand 3, single buffered']
    #allocation6 [shape = 's32[1]{0}', space=sflag, size = 0x4, scoped, tag = 'scoped memory for tpu_custom_call.1']
    #allocation7 [shape = 'u8[4096]{0}', space=vmem, size = 0x1000, scoped, tag = 'output window, operand 0, single buffered']
    %10 = vsyncpa [#allocation3], 0
    %11 = vsyncpa [#allocation6], 0
    %12 = vsyncpa [#allocation4], 0
    // Predicated region
    $region2: #{tpu_custom_call.1} parent=1 // pred_check
      _
    $region3: #{tpu_custom_call.1} parent=1 // pred_check_branch
      %14 = sbr.rel (0) target = $region5
    $region4: #{tpu_custom_call.1} parent=1 // pred_region
      _
    $region5: #{tpu_custom_call.1} parent=1 // pred_fallthru
      _
    // Predicated region
    $region6: #{tpu_custom_call.1} parent=1 // pred_check
      _
    $region7: #{tpu_custom_call.1} parent=1 // pred_check_branch
      %16 = sbr.rel (0) target = $region9
    $region8: #{tpu_custom_call.1} parent=1 // pred_region
      %s18 = ssub.s32 2048, 2048
      %19 = vsyncadd [#allocation3], %s18
      %s20 = sshll.u32 [#allocation2], 4
      %s21 = int_to_ptr.vmem [resolvable:$true] %s20
      %26 = dma.hbm_to_vmem [thread:$0]  %s1, 2048, %s21, [#allocation3], 64, 64, 4
    $region9: #{tpu_custom_call.1} parent=1 // pred_fallthru
      _
    // Predicated region
    $region10: #{tpu_custom_call.1} parent=1 // pred_check
      _
    $region11: #{tpu_custom_call.1} parent=1 // pred_check_branch
      %28 = sbr.rel (0) target = $region13
    $region12: #{tpu_custom_call.1} parent=1 // pred_region
      _
    $region13: #{tpu_custom_call.1} parent=1 // pred_fallthru
      _
    // Predicated region
    $region14: #{tpu_custom_call.1} parent=1 // pred_check
      _
    $region15: #{tpu_custom_call.1} parent=1 // pred_check_branch
      %30 = sbr.rel (0) target = $region17
    $region16: #{tpu_custom_call.1} parent=1 // pred_region
      %s32 = ssub.s32 1024, 1024
      %33 = vsyncadd [#allocation6], %s32
      %s34 = sshll.u32 [#allocation5], 4
      %s35 = int_to_ptr.vmem [resolvable:$true] %s34
      %40 = dma.hbm_to_vmem [thread:$0]  %s3, 1024, %s35, [#allocation6], 64, 64, 4
    $region17: #{tpu_custom_call.1} parent=1 // pred_fallthru
      _
    // Predicated region
    $region18: #{tpu_custom_call.1} parent=1 // pred_check
      _
    $region19: #{tpu_custom_call.1} parent=1 // pred_check_branch
      %42 = sbr.rel (0) target = $region21
    $region20: #{tpu_custom_call.1} parent=1 // pred_region
      _
    $region21: #{tpu_custom_call.1} parent=1 // pred_fallthru
      _
    // Predicated region
    $region22: #{tpu_custom_call.1} parent=1 // pred_check
      _
    $region23: #{tpu_custom_call.1} parent=1 // pred_check_branch
      %44 = sbr.rel (0) target = $region25
    $region24: #{tpu_custom_call.1} parent=1 // pred_region
      %45 = dma.done [#allocation3], 2048
    $region25: #{tpu_custom_call.1} parent=1 // pred_fallthru
      _
    // Predicated region
    $region26: #{tpu_custom_call.1} parent=1 // pred_check
      _
    $region27: #{tpu_custom_call.1} parent=1 // pred_check_branch
      %47 = sbr.rel (0) target = $region29
    $region28: #{tpu_custom_call.1} parent=1 // pred_region
      %48 = dma.done [#allocation6], 1024
    $region29: #{tpu_custom_call.1} parent=1 // pred_fallthru
      _
    %v50 = vld [vmem:[#allocation2] sm:$0xf]
    %v51 = vld [vmem:[#allocation2 + $0x4] sm:$0xf]
    %v52 = vld [vmem:[#allocation2 + $0x8] sm:$0xf]
    %v53 = vld [vmem:[#allocation2 + $0xc] sm:$0xf]
    %v54 = vld [vmem:[%s0] sm:$0xf]
    %v55 = vld [vmem:[%s0 + $0x4] sm:$0xf]
    %v56 = vld [vmem:[%s2] sm:$0x7]
    %v57 = vlaneseq
    %v58 = vshrl.u32 %v57, 7
    %v59 = vsub.s32 0, %v58
    %v60 = vrot.slane %v56, %v59
    %v63 = vunpack.c.l.b16 %v54
    %v64 = vunpack.c.l.b16 %v55
    %v65 = vpack.c.b16 %v64, %v63
    %v70 = vunpack.c.l.b16 %v50
    %v71 = vunpack.c.l.b16 %v51
    %v72 = vunpack.c.l.b16 %v52
    %v73 = vunpack.c.l.b16 %v53
    %v74 = vpack.c.b16 %v71, %v70
    %v75 = vpack.c.b16 %v73, %v72
    %vm78 = vcmask 261120
    %v80 = vsel %vm78, %v65, 0
    %82 = vmatprep.subr.bf16.mxu0 0
    %83 = vmatpush1.bf16.msra.mxu0 %v74
    %84 = vmatprep.subr.bf16.mxu0 0
    %85 = vmatpush1.bf16.msra.mxu0 %v75
    %86 = vmatprep.subr.bf16.mxu0 0
    %87 = vmatpush1.bf16.msra.mxu0 0
    %88 = vmatprep.subr.bf16.mxu0 0
    %89 = vmatpush1.bf16.msra.mxu0 0
    %90 = vmatprep.subr.bf16.mxu0 0
    %91 = vmatpush1.bf16.msra.mxu0 0
    %92 = vmatprep.subr.bf16.mxu0 0
    %93 = vmatpush1.bf16.msra.mxu0 0
    %94 = vmatprep.subr.bf16.mxu0 0
    %95 = vmatpush1.bf16.msra.mxu0 0
    %96 = vmatprep.subr.bf16.mxu0 0
    %97 = vmatpush1.bf16.msra.mxu0 0
    %98 = vmatprep.subr.bf16.mxu0 0
    %99 = vmatpush1.bf16.msra.mxu0 0
    %100 = vmatprep.subr.bf16.mxu0 0
    %101 = vmatpush1.bf16.msra.mxu0 0
    %102 = vmatprep.subr.bf16.mxu0 0
    %103 = vmatpush1.bf16.msra.mxu0 0
    %104 = vmatprep.subr.bf16.mxu0 0
    %105 = vmatpush1.bf16.msra.mxu0 0
    %106 = vmatprep.subr.bf16.mxu0 0
    %107 = vmatpush1.bf16.msra.mxu0 0
    %108 = vmatprep.subr.bf16.mxu0 0
    %109 = vmatpush1.bf16.msra.mxu0 0
    %110 = vmatprep.subr.bf16.mxu0 0
    %111 = vmatpush1.bf16.msra.mxu0 0
    %112 = vmatprep.subr.bf16.mxu0 0
    %113 = vmatpush1.bf16.msra.mxu0 0
    %114 = vmatprep.mubr.bf16.mxu0 0
    %115 = vmatmul.mubr.bf16.gmra.mrb[0].mxu0 %v80
    %v116 = vpop.f32.mrb[0].mxu0
    %v117 = vadd.f32 %v60, %v116
    %v118 = vpop.f32.mrb[0].mxu0
    %v119 = vpop.f32.mrb[0].mxu0
    %v120 = vadd.f32 %v60, %v119
    %v121 = vpop.f32.mrb[0].mxu0
    %122 = vdwg.mxu0
    %123 = vadd.xlane.f32.xlu0 %v117
    %v124 = vpop.xlane.xlu0 %123
    %125 = vadd.xlane.f32.xlu0 %v120
    %v126 = vpop.xlane.xlu0 %125
    %v127 = vmul.f32 %v117, %v117
    %v128 = vmul.f32 %v120, %v120
    %129 = vadd.xlane.f32.xlu0 %v127
    %v130 = vpop.xlane.xlu0 %129
    %131 = vadd.xlane.f32.xlu0 %v128
    %v132 = vpop.xlane.xlu0 %131
    %v133 = vmul.f32 %v124, 0.03125
    %v134 = vmul.f32 %v126, 0.03125
    %v135 = vmul.f32 %v130, 0.03125
    %v136 = vmul.f32 %v132, 0.03125
    %v137 = vmul.f32 %v133, %v133
    %v138 = vmul.f32 %v134, %v134
    %v139 = vsub.f32 %v135, %v137
    %v140 = vsub.f32 %v136, %v138
    %v141 = vmax.f32 %v139, 0.0
    %v142 = vmax.f32 %v140, 0.0
    %v143 = vsub.f32 %v117, %v133
    %v144 = vsub.f32 %v120, %v134
    %v145 = vadd.f32 %v141, 1e-05
    %v146 = vadd.f32 %v142, 1e-05
    %v147 = vrsqrt.pop %v145
    %v148 = vrsqrt.pop %v146
    %v149 = vmul.f32 %v143, %v147
    %v150 = vmul.f32 %v144, %v148
    %v151 = vlaneseq
    %v152 = vshrl.u32 %v151, 7
    %v153 = vsub.s32 1, %v152
    %v154 = vrot.slane %v56, %v153
    %v155 = vmul.f32 %v149, %v154
    %v156 = vmul.f32 %v150, %v154
    %v157 = vlaneseq
    %v158 = vshrl.u32 %v157, 7
    %v159 = vsub.s32 2, %v158
    %v160 = vrot.slane %v56, %v159
    %v161 = vadd.f32 %v155, %v160
    %v162 = vadd.f32 %v156, %v160
    %v163 = vmax.f32 %v161, 0.0
    %v164 = vmax.f32 %v162, 0.0
    %v165 = vpack.c.bf16 %v164, %v163
    %s166 = scalar_lea.vmem [#allocation2], 64
    %v167 = vld [vmem:[%s166] sm:$0xf]
    %v168 = vld [vmem:[%s166 + $0x4] sm:$0xf]
    %v169 = vld [vmem:[%s166 + $0x8] sm:$0xf]
    %v170 = vld [vmem:[%s166 + $0xc] sm:$0xf]
    %v171 = vld [vmem:[%s166 + $0x10] sm:$0xf]
    %v172 = vld [vmem:[%s166 + $0x14] sm:$0xf]
    %v173 = vld [vmem:[%s166 + $0x18] sm:$0xf]
    %v174 = vld [vmem:[%s166 + $0x1c] sm:$0xf]
    %v175 = vld [vmem:[%s166 + $0x20] sm:$0xf]
    %v176 = vld [vmem:[%s166 + $0x24] sm:$0xf]
    %v177 = vld [vmem:[%s166 + $0x28] sm:$0xf]
    %v178 = vld [vmem:[%s166 + $0x2c] sm:$0xf]
    %v179 = vld [vmem:[%s166 + $0x30] sm:$0xf]
    %v180 = vld [vmem:[%s166 + $0x34] sm:$0xf]
    %v181 = vld [vmem:[%s166 + $0x38] sm:$0xf]
    %v182 = vld [vmem:[%s166 + $0x3c] sm:$0xf]
    %s183 = scalar_lea.vmem %s2, 4
    %v184 = vld [vmem:[%s183] sm:$0x7]
    %v185 = vlaneseq
    %v186 = vshrl.u32 %v185, 7
    %v187 = vsub.s32 0, %v186
    %v188 = vrot.slane %v184, %v187
    %v205 = vunpack.c.l.b16 %v167
    %v206 = vunpack.c.l.b16 %v168
    %v207 = vunpack.c.l.b16 %v169
    %v208 = vunpack.c.l.b16 %v170
    %v209 = vunpack.c.l.b16 %v171
    %v210 = vunpack.c.l.b16 %v172
    %v211 = vunpack.c.l.b16 %v173
    %v212 = vunpack.c.l.b16 %v174
    %v213 = vunpack.c.l.b16 %v175
    %v214 = vunpack.c.l.b16 %v176
    %v215 = vunpack.c.l.b16 %v177
    %v216 = vunpack.c.l.b16 %v178
    %v217 = vunpack.c.l.b16 %v179
    %v218 = vunpack.c.l.b16 %v180
    %v219 = vunpack.c.l.b16 %v181
    %v220 = vunpack.c.l.b16 %v182
    %v221 = vpack.c.b16 %v206, %v205
    %v222 = vpack.c.b16 %v208, %v207
    %v223 = vpack.c.b16 %v210, %v209
    %v224 = vpack.c.b16 %v212, %v211
    %v225 = vpack.c.b16 %v214, %v213
    %v226 = vpack.c.b16 %v216, %v215
    %v227 = vpack.c.b16 %v218, %v217
    %v228 = vpack.c.b16 %v220, %v219
    %237 = vmatprep.subr.bf16.mxu0 0
    %238 = vmatpush1.bf16.msra.mxu0 %v221
    %239 = vmatprep.subr.bf16.mxu0 0
    %240 = vmatpush1.bf16.msra.mxu0 %v222
    %241 = vmatprep.subr.bf16.mxu0 0
    %242 = vmatpush1.bf16.msra.mxu0 %v223
    %243 = vmatprep.subr.bf16.mxu0 0
    %244 = vmatpush1.bf16.msra.mxu0 %v224
    %245 = vmatprep.subr.bf16.mxu0 0
    %246 = vmatpush1.bf16.msra.mxu0 %v225
    %247 = vmatprep.subr.bf16.mxu0 0
    %248 = vmatpush1.bf16.msra.mxu0 %v226
    %249 = vmatprep.subr.bf16.mxu0 0
    %250 = vmatpush1.bf16.msra.mxu0 %v227
    %251 = vmatprep.subr.bf16.mxu0 0
    %252 = vmatpush1.bf16.msra.mxu0 %v228
    %253 = vmatprep.subr.bf16.mxu0 0
    %254 = vmatpush1.bf16.msra.mxu0 0
    %255 = vmatprep.subr.bf16.mxu0 0
    %256 = vmatpush1.bf16.msra.mxu0 0
    %257 = vmatprep.subr.bf16.mxu0 0
    %258 = vmatpush1.bf16.msra.mxu0 0
    %259 = vmatprep.subr.bf16.mxu0 0
    %260 = vmatpush1.bf16.msra.mxu0 0
    %261 = vmatprep.subr.bf16.mxu0 0
    %262 = vmatpush1.bf16.msra.mxu0 0
    %263 = vmatprep.subr.bf16.mxu0 0
    %264 = vmatpush1.bf16.msra.mxu0 0
    %265 = vmatprep.subr.bf16.mxu0 0
    %266 = vmatpush1.bf16.msra.mxu0 0
    %267 = vmatprep.subr.bf16.mxu0 0
    %268 = vmatpush1.bf16.msra.mxu0 0
    %269 = vmatprep.mubr.bf16.mxu0 0
    %270 = vmatmul.mubr.bf16.gmra.mrb[0].mxu0 %v165
    %v271 = vpop.f32.mrb[0].mxu0
    %v272 = vadd.f32 %v188, %v271
    %v273 = vpop.f32.mrb[0].mxu0
    %v274 = vpop.f32.mrb[0].mxu0
    %v275 = vadd.f32 %v188, %v274
    %v276 = vpop.f32.mrb[0].mxu0
    %277 = vdwg.mxu0
    %278 = vadd.xlane.f32.xlu0 %v272
    %v279 = vpop.xlane.xlu0 %278
    %280 = vadd.xlane.f32.xlu0 %v275
    %v281 = vpop.xlane.xlu0 %280
    %v282 = vmul.f32 %v272, %v272
    %v283 = vmul.f32 %v275, %v275
    %284 = vadd.xlane.f32.xlu0 %v282
    %v285 = vpop.xlane.xlu0 %284
    %286 = vadd.xlane.f32.xlu0 %v283
    %v287 = vpop.xlane.xlu0 %286
    %v288 = vmul.f32 %v279, 0.03125
    %v289 = vmul.f32 %v281, 0.03125
    %v290 = vmul.f32 %v285, 0.03125
    %v291 = vmul.f32 %v287, 0.03125
    %v292 = vmul.f32 %v288, %v288
    %v293 = vmul.f32 %v289, %v289
    %v294 = vsub.f32 %v290, %v292
    %v295 = vsub.f32 %v291, %v293
    %v296 = vmax.f32 %v294, 0.0
    %v297 = vmax.f32 %v295, 0.0
    %v298 = vsub.f32 %v272, %v288
    %v299 = vsub.f32 %v275, %v289
    %v300 = vadd.f32 %v296, 1e-05
    %v301 = vadd.f32 %v297, 1e-05
    %v302 = vrsqrt.pop %v300
    %v303 = vrsqrt.pop %v301
    %v304 = vmul.f32 %v298, %v302
    %v305 = vmul.f32 %v299, %v303
    %v306 = vlaneseq
    %v307 = vshrl.u32 %v306, 7
    %v308 = vsub.s32 1, %v307
    %v309 = vrot.slane %v184, %v308
    %v310 = vmul.f32 %v304, %v309
    %v311 = vmul.f32 %v305, %v309
    %v312 = vlaneseq
    %v313 = vshrl.u32 %v312, 7
    %v314 = vsub.s32 2, %v313
    %v315 = vrot.slane %v184, %v314
    %v316 = vadd.f32 %v310, %v315
    %v317 = vadd.f32 %v311, %v315
    %v318 = vmax.f32 %v316, 0.0
    %v319 = vmax.f32 %v317, 0.0
    %v320 = vpack.c.bf16 %v319, %v318
    %v321 = vld [vmem:[#allocation5] sm:$0xf]
    %v322 = vld [vmem:[#allocation5 + $0x4] sm:$0xf]
    %v323 = vld [vmem:[#allocation5 + $0x8] sm:$0xf]
    %v324 = vld [vmem:[#allocation5 + $0xc] sm:$0xf]
    %v325 = vld [vmem:[#allocation5 + $0x10] sm:$0xf]
    %v326 = vld [vmem:[#allocation5 + $0x14] sm:$0xf]
    %v327 = vld [vmem:[#allocation5 + $0x18] sm:$0xf]
    %v328 = vld [vmem:[#allocation5 + $0x1c] sm:$0xf]
    %v329 = vld [vmem:[#allocation5 + $0x20] sm:$0xf]
    %v330 = vld [vmem:[#allocation5 + $0x24] sm:$0xf]
    %v331 = vld [vmem:[#allocation5 + $0x28] sm:$0xf]
    %v332 = vld [vmem:[#allocation5 + $0x2c] sm:$0xf]
    %v333 = vld [vmem:[#allocation5 + $0x30] sm:$0xf]
    %v334 = vld [vmem:[#allocation5 + $0x34] sm:$0xf]
    %v335 = vld [vmem:[#allocation5 + $0x38] sm:$0xf]
    %v336 = vld [vmem:[#allocation5 + $0x3c] sm:$0xf]
    %v337 = vld [vmem:[%s4] sm:$0x1]
    %v339 = vlaneseq
    %v340 = vshrl.u32 %v339, 7
    %v341 = vsub.s32 0, %v340
    %v342 = vrot.slane %v337, %v341
    %v360 = vunpack.c.l.b16 %v321
    %v361 = vunpack.c.l.b16 %v322
    %v362 = vunpack.c.l.b16 %v323
    %v363 = vunpack.c.l.b16 %v324
    %v364 = vunpack.c.l.b16 %v325
    %v365 = vunpack.c.l.b16 %v326
    %v366 = vunpack.c.l.b16 %v327
    %v367 = vunpack.c.l.b16 %v328
    %v368 = vunpack.c.l.b16 %v329
    %v369 = vunpack.c.l.b16 %v330
    %v370 = vunpack.c.l.b16 %v331
    %v371 = vunpack.c.l.b16 %v332
    %v372 = vunpack.c.l.b16 %v333
    %v373 = vunpack.c.l.b16 %v334
    %v374 = vunpack.c.l.b16 %v335
    %v375 = vunpack.c.l.b16 %v336
    %v376 = vpack.c.b16 %v361, %v360
    %v377 = vpack.c.b16 %v363, %v362
    %v378 = vpack.c.b16 %v365, %v364
    %v379 = vpack.c.b16 %v367, %v366
    %v380 = vpack.c.b16 %v369, %v368
    %v381 = vpack.c.b16 %v371, %v370
    %v382 = vpack.c.b16 %v373, %v372
    %v383 = vpack.c.b16 %v375, %v374
    %392 = vmatprep.subr.bf16.mxu0 0
    %393 = vmatpush1.bf16.msra.mxu0 %v376
    %394 = vmatprep.subr.bf16.mxu0 0
    %395 = vmatpush1.bf16.msra.mxu0 %v377
    %396 = vmatprep.subr.bf16.mxu0 0
    %397 = vmatpush1.bf16.msra.mxu0 %v378
    %398 = vmatprep.subr.bf16.mxu0 0
    %399 = vmatpush1.bf16.msra.mxu0 %v379
    %400 = vmatprep.subr.bf16.mxu0 0
    %401 = vmatpush1.bf16.msra.mxu0 %v380
    %402 = vmatprep.subr.bf16.mxu0 0
    %403 = vmatpush1.bf16.msra.mxu0 %v381
    %404 = vmatprep.subr.bf16.mxu0 0
    %405 = vmatpush1.bf16.msra.mxu0 %v382
    %406 = vmatprep.subr.bf16.mxu0 0
    %407 = vmatpush1.bf16.msra.mxu0 %v383
    %408 = vmatprep.subr.bf16.mxu0 0
    %409 = vmatpush1.bf16.msra.mxu0 0
    %410 = vmatprep.subr.bf16.mxu0 0
    %411 = vmatpush1.bf16.msra.mxu0 0
    %412 = vmatprep.subr.bf16.mxu0 0
    %413 = vmatpush1.bf16.msra.mxu0 0
    %414 = vmatprep.subr.bf16.mxu0 0
    %415 = vmatpush1.bf16.msra.mxu0 0
    %416 = vmatprep.subr.bf16.mxu0 0
    %417 = vmatpush1.bf16.msra.mxu0 0
    %418 = vmatprep.subr.bf16.mxu0 0
    %419 = vmatpush1.bf16.msra.mxu0 0
    %420 = vmatprep.subr.bf16.mxu0 0
    %421 = vmatpush1.bf16.msra.mxu0 0
    %422 = vmatprep.subr.bf16.mxu0 0
    %423 = vmatpush1.bf16.msra.mxu0 0
    %424 = vmatprep.mubr.bf16.mxu0 0
    %425 = vmatmul.mubr.bf16.gmra.mrb[0].mxu0 %v320
    %v426 = vpop.f32.mrb[0].mxu0
    %v427 = vadd.f32 %v342, %v426
    %v428 = vpop.f32.mrb[0].mxu0
    %v429 = vpop.f32.mrb[0].mxu0
    %v430 = vadd.f32 %v342, %v429
    %v431 = vpop.f32.mrb[0].mxu0
    %432 = vdwg.mxu0
    %v433 = vpack.c.bf16 %v430, %v427
    %v435 = vunpack.c.l.b16 %v433
    %v436 = vunpack.c.h.b16 %v433
    %v437 = vpack.c.b16 %v435, %v435
    %v438 = vpack.c.b16 %v436, %v436
    %441 = vst [vmem:[#allocation7] sm:$0xf] %v437
    %442 = vst [vmem:[#allocation7 + $0x4] sm:$0xf] %v438
    // Predicated region
    $region30: #{tpu_custom_call.1} parent=1 // pred_check
      _
    $region31: #{tpu_custom_call.1} parent=1 // pred_check_branch
      %444 = sbr.rel (0) target = $region33
    $region32: #{tpu_custom_call.1} parent=1 // pred_region
      %s446 = ssub.s32 128, 128
      %447 = vsyncadd [#allocation4], %s446
      %s448 = sshll.u32 [#allocation7], 4
      %s449 = int_to_ptr.vmem [resolvable:$true] %s448
      %454 = dma.vmem_to_hbm [thread:$0]  %s449, 128, %s5, [#allocation4], 64, 64, 4
    $region33: #{tpu_custom_call.1} parent=1 // pred_fallthru
      _
    // Predicated region
    $region34: #{tpu_custom_call.1} parent=1 // pred_check
      _
    $region35: #{tpu_custom_call.1} parent=1 // pred_check_branch
      %456 = sbr.rel (0) target = $region37
    $region36: #{tpu_custom_call.1} parent=1 // pred_region
      %457 = dma.done [#allocation4], 128
    $region37: #{tpu_custom_call.1} parent=1 // pred_fallthru
      _
    %458 = vsyncpa [#allocation3], 1
    %459 = vsyncpa [#allocation6], 1
    %460 = vsyncpa [#allocation4], 1

// kernel: tpu_custom_call.1
$region0: #{tpu_custom_call.1}
  #allocation0 [shape = 'u32[]', space=smem, size = 0x4, offset = 0x4, fixed_abs, tag = 'smem constant byte address 0x4 - core index']
  #allocation1 [shape = 'u32[144,128]{1,0:T(1,128)}', space=vmem, size = 0x12000, scoped, tag = 'internal scratch']
  %s0 = inlined_call_operand.vmem [shape: bf16[16,32], index: 0, kind: input, shape index: {}]
  %s1 = inlined_call_operand.hbm [shape: bf16[2,128,128], index: 1, kind: input, shape index: {}]
  %s2 = inlined_call_operand.vmem [shape: f32[2,3,128], index: 2, kind: input, shape index: {}]
  %s3 = inlined_call_operand.hbm [shape: bf16[128,128], index: 3, kind: input, shape index: {}]
  %s4 = inlined_call_operand.vmem [shape: f32[1,128], index: 4, kind: input, shape index: {}]
  %s5 = inlined_call_operand.hbm [shape: bf16[16,128], index: 5, kind: output, shape index: {}]
  %s6 = sld [smem:[#allocation0]]
  $region38: #{tpu_custom_call.1} parent=0
    _
  %s8 = ssub.s32 1, %s6
  %s9 = scalar_select 0, %s8, %s6
  $region1: #{tpu_custom_call.1} parent=0
    #allocation2 [shape = 'u8[65536]{0}', space=vmem, size = 0x10000, scoped, tag = 'input window, operand 1, single buffered']
    #allocation3 [shape = 's32[1]{0}', space=sflag, size = 0x4, scoped, tag = 'scoped memory for tpu_custom_call.1']
    #allocation4 [shape = 's32[1]{0}', space=sflag, size = 0x4, scoped, tag = 'scoped memory for tpu_custom_call.1']
    #allocation5 [shape = 'u8[32768]{0}', space=vmem, size = 0x8000, scoped, tag = 'input window, operand 3, single buffered']
    #allocation6 [shape = 's32[1]{0}', space=sflag, size = 0x4, scoped, tag = 'scoped memory for tpu_custom_call.1']
    #allocation7 [shape = 'u8[4096]{0}', space=vmem, size = 0x1000, scoped, tag = 'output window, operand 0, single buffered']
    %10 = vsyncpa [#allocation3], 0
    %11 = vsyncpa [#allocation6], 0
    %12 = vsyncpa [#allocation4], 0
    // Predicated region
    $region2: #{tpu_custom_call.1} parent=1 // pred_check
      _
    $region3: #{tpu_custom_call.1} parent=1 // pred_check_branch
      %14 = sbr.rel (0) target = $region5
    $region4: #{tpu_custom_call.1} parent=1 // pred_region
      _
    $region5: #{tpu_custom_call.1} parent=1 // pred_fallthru
      _
    // Predicated region
    $region6: #{tpu_custom_call.1} parent=1 // pred_check
      _
    $region7: #{tpu_custom_call.1} parent=1 // pred_check_branch
      %16 = sbr.rel (0) target = $region9
    $region8: #{tpu_custom_call.1} parent=1 // pred_region
      %s18 = ssub.s32 2048, 2048
      %19 = vsyncadd [#allocation3], %s18
      %s20 = sshll.u32 [#allocation2], 4
      %s21 = int_to_ptr.vmem [resolvable:$true] %s20
      %26 = dma.hbm_to_vmem [thread:$0]  %s1, 2048, %s21, [#allocation3], 64, 64, 4
    $region9: #{tpu_custom_call.1} parent=1 // pred_fallthru
      _
    // Predicated region
    $region10: #{tpu_custom_call.1} parent=1 // pred_check
      _
    $region11: #{tpu_custom_call.1} parent=1 // pred_check_branch
      %28 = sbr.rel (0) target = $region13
    $region12: #{tpu_custom_call.1} parent=1 // pred_region
      _
    $region13: #{tpu_custom_call.1} parent=1 // pred_fallthru
      _
    // Predicated region
    $region14: #{tpu_custom_call.1} parent=1 // pred_check
      _
    $region15: #{tpu_custom_call.1} parent=1 // pred_check_branch
      %30 = sbr.rel (0) target = $region17
    $region16: #{tpu_custom_call.1} parent=1 // pred_region
      %s32 = ssub.s32 1024, 1024
      %33 = vsyncadd [#allocation6], %s32
      %s34 = sshll.u32 [#allocation5], 4
      %s35 = int_to_ptr.vmem [resolvable:$true] %s34
      %40 = dma.hbm_to_vmem [thread:$0]  %s3, 1024, %s35, [#allocation6], 64, 64, 4
    $region17: #{tpu_custom_call.1} parent=1 // pred_fallthru
      _
    // Predicated region
    $region18: #{tpu_custom_call.1} parent=1 // pred_check
      _
    $region19: #{tpu_custom_call.1} parent=1 // pred_check_branch
      %42 = sbr.rel (0) target = $region21
    $region20: #{tpu_custom_call.1} parent=1 // pred_region
      _
    $region21: #{tpu_custom_call.1} parent=1 // pred_fallthru
      _
    // Predicated region
    $region22: #{tpu_custom_call.1} parent=1 // pred_check
      _
    $region23: #{tpu_custom_call.1} parent=1 // pred_check_branch
      %44 = sbr.rel (0) target = $region25
    $region24: #{tpu_custom_call.1} parent=1 // pred_region
      %45 = dma.done [#allocation3], 2048
    $region25: #{tpu_custom_call.1} parent=1 // pred_fallthru
      _
    // Predicated region
    $region26: #{tpu_custom_call.1} parent=1 // pred_check
      _
    $region27: #{tpu_custom_call.1} parent=1 // pred_check_branch
      %47 = sbr.rel (0) target = $region29
    $region28: #{tpu_custom_call.1} parent=1 // pred_region
      %48 = dma.done [#allocation6], 1024
    $region29: #{tpu_custom_call.1} parent=1 // pred_fallthru
      _
    %v50 = vld [vmem:[#allocation2] sm:$0xf]
    %v51 = vld [vmem:[#allocation2 + $0x4] sm:$0xf]
    %v52 = vld [vmem:[#allocation2 + $0x8] sm:$0xf]
    %v53 = vld [vmem:[#allocation2 + $0xc] sm:$0xf]
    %v54 = vld [vmem:[%s0] sm:$0xf]
    %v55 = vld [vmem:[%s0 + $0x4] sm:$0xf]
    %v56 = vld [vmem:[%s2] sm:$0x7]
    %v57 = vlaneseq
    %v58 = vshrl.u32 %v57, 7
    %v59 = vsub.s32 0, %v58
    %v60 = vrot.slane %v56, %v59
    %v63 = vunpack.c.l.b16 %v54
    %v64 = vunpack.c.l.b16 %v55
    %v65 = vpack.c.b16 %v64, %v63
    %v70 = vunpack.c.l.b16 %v50
    %v71 = vunpack.c.l.b16 %v51
    %v72 = vunpack.c.l.b16 %v52
    %v73 = vunpack.c.l.b16 %v53
    %v74 = vpack.c.b16 %v71, %v70
    %v75 = vpack.c.b16 %v73, %v72
    %vm78 = vcmask 261120
    %v80 = vsel %vm78, %v65, 0
    %82 = vmatprep.subr.bf16.mxu0 0
    %83 = vmatpush1.bf16.msra.mxu0 %v74
    %84 = vmatprep.subr.bf16.mxu0 0
    %85 = vmatpush1.bf16.msra.mxu0 %v75
    %86 = vmatprep.subr.bf16.mxu0 0
    %87 = vmatpush1.bf16.msra.mxu0 0
    %88 = vmatprep.subr.bf16.mxu0 0
    %89 = vmatpush1.bf16.msra.mxu0 0
    %90 = vmatprep.subr.bf16.mxu0 0
    %91 = vmatpush1.bf16.msra.mxu0 0
    %92 = vmatprep.subr.bf16.mxu0 0
    %93 = vmatpush1.bf16.msra.mxu0 0
    %94 = vmatprep.subr.bf16.mxu0 0
    %95 = vmatpush1.bf16.msra.mxu0 0
    %96 = vmatprep.subr.bf16.mxu0 0
    %97 = vmatpush1.bf16.msra.mxu0 0
    %98 = vmatprep.subr.bf16.mxu0 0
    %99 = vmatpush1.bf16.msra.mxu0 0
    %100 = vmatprep.subr.bf16.mxu0 0
    %101 = vmatpush1.bf16.msra.mxu0 0
    %102 = vmatprep.subr.bf16.mxu0 0
    %103 = vmatpush1.bf16.msra.mxu0 0
    %104 = vmatprep.subr.bf16.mxu0 0
    %105 = vmatpush1.bf16.msra.mxu0 0
    %106 = vmatprep.subr.bf16.mxu0 0
    %107 = vmatpush1.bf16.msra.mxu0 0
    %108 = vmatprep.subr.bf16.mxu0 0
    %109 = vmatpush1.bf16.msra.mxu0 0
    %110 = vmatprep.subr.bf16.mxu0 0
    %111 = vmatpush1.bf16.msra.mxu0 0
    %112 = vmatprep.subr.bf16.mxu0 0
    %113 = vmatpush1.bf16.msra.mxu0 0
    %114 = vmatprep.mubr.bf16.mxu0 0
    %115 = vmatmul.mubr.bf16.gmra.mrb[0].mxu0 %v80
    %v116 = vpop.f32.mrb[0].mxu0
    %v117 = vadd.f32 %v60, %v116
    %v118 = vpop.f32.mrb[0].mxu0
    %v119 = vpop.f32.mrb[0].mxu0
    %v120 = vadd.f32 %v60, %v119
    %v121 = vpop.f32.mrb[0].mxu0
    %122 = vdwg.mxu0
    %123 = vadd.xlane.f32.xlu0 %v117
    %v124 = vpop.xlane.xlu0 %123
    %125 = vadd.xlane.f32.xlu0 %v120
    %v126 = vpop.xlane.xlu0 %125
    %v127 = vmul.f32 %v117, %v117
    %v128 = vmul.f32 %v120, %v120
    %129 = vadd.xlane.f32.xlu0 %v127
    %v130 = vpop.xlane.xlu0 %129
    %131 = vadd.xlane.f32.xlu0 %v128
    %v132 = vpop.xlane.xlu0 %131
    %v133 = vmul.f32 %v124, 0.03125
    %v134 = vmul.f32 %v126, 0.03125
    %v135 = vmul.f32 %v130, 0.03125
    %v136 = vmul.f32 %v132, 0.03125
    %v137 = vmul.f32 %v133, %v133
    %v138 = vmul.f32 %v134, %v134
    %v139 = vsub.f32 %v135, %v137
    %v140 = vsub.f32 %v136, %v138
    %v141 = vmax.f32 %v139, 0.0
    %v142 = vmax.f32 %v140, 0.0
    %v143 = vsub.f32 %v117, %v133
    %v144 = vsub.f32 %v120, %v134
    %v145 = vadd.f32 %v141, 1e-05
    %v146 = vadd.f32 %v142, 1e-05
    %v147 = vrsqrt.pop %v145
    %v148 = vrsqrt.pop %v146
    %v149 = vmul.f32 %v143, %v147
    %v150 = vmul.f32 %v144, %v148
    %v151 = vlaneseq
    %v152 = vshrl.u32 %v151, 7
    %v153 = vsub.s32 1, %v152
    %v154 = vrot.slane %v56, %v153
    %v155 = vmul.f32 %v149, %v154
    %v156 = vmul.f32 %v150, %v154
    %v157 = vlaneseq
    %v158 = vshrl.u32 %v157, 7
    %v159 = vsub.s32 2, %v158
    %v160 = vrot.slane %v56, %v159
    %v161 = vadd.f32 %v155, %v160
    %v162 = vadd.f32 %v156, %v160
    %v163 = vmax.f32 %v161, 0.0
    %v164 = vmax.f32 %v162, 0.0
    %v165 = vpack.c.bf16 %v164, %v163
    %s166 = scalar_lea.vmem [#allocation2], 64
    %v167 = vld [vmem:[%s166] sm:$0xf]
    %v168 = vld [vmem:[%s166 + $0x4] sm:$0xf]
    %v169 = vld [vmem:[%s166 + $0x8] sm:$0xf]
    %v170 = vld [vmem:[%s166 + $0xc] sm:$0xf]
    %v171 = vld [vmem:[%s166 + $0x10] sm:$0xf]
    %v172 = vld [vmem:[%s166 + $0x14] sm:$0xf]
    %v173 = vld [vmem:[%s166 + $0x18] sm:$0xf]
    %v174 = vld [vmem:[%s166 + $0x1c] sm:$0xf]
    %v175 = vld [vmem:[%s166 + $0x20] sm:$0xf]
    %v176 = vld [vmem:[%s166 + $0x24] sm:$0xf]
    %v177 = vld [vmem:[%s166 + $0x28] sm:$0xf]
    %v178 = vld [vmem:[%s166 + $0x2c] sm:$0xf]
    %v179 = vld [vmem:[%s166 + $0x30] sm:$0xf]
    %v180 = vld [vmem:[%s166 + $0x34] sm:$0xf]
    %v181 = vld [vmem:[%s166 + $0x38] sm:$0xf]
    %v182 = vld [vmem:[%s166 + $0x3c] sm:$0xf]
    %s183 = scalar_lea.vmem %s2, 4
    %v184 = vld [vmem:[%s183] sm:$0x7]
    %v185 = vlaneseq
    %v186 = vshrl.u32 %v185, 7
    %v187 = vsub.s32 0, %v186
    %v188 = vrot.slane %v184, %v187
    %v205 = vunpack.c.l.b16 %v167
    %v206 = vunpack.c.l.b16 %v168
    %v207 = vunpack.c.l.b16 %v169
    %v208 = vunpack.c.l.b16 %v170
    %v209 = vunpack.c.l.b16 %v171
    %v210 = vunpack.c.l.b16 %v172
    %v211 = vunpack.c.l.b16 %v173
    %v212 = vunpack.c.l.b16 %v174
    %v213 = vunpack.c.l.b16 %v175
    %v214 = vunpack.c.l.b16 %v176
    %v215 = vunpack.c.l.b16 %v177
    %v216 = vunpack.c.l.b16 %v178
    %v217 = vunpack.c.l.b16 %v179
    %v218 = vunpack.c.l.b16 %v180
    %v219 = vunpack.c.l.b16 %v181
    %v220 = vunpack.c.l.b16 %v182
    %v221 = vpack.c.b16 %v206, %v205
    %v222 = vpack.c.b16 %v208, %v207
    %v223 = vpack.c.b16 %v210, %v209
    %v224 = vpack.c.b16 %v212, %v211
    %v225 = vpack.c.b16 %v214, %v213
    %v226 = vpack.c.b16 %v216, %v215
    %v227 = vpack.c.b16 %v218, %v217
    %v228 = vpack.c.b16 %v220, %v219
    %237 = vmatprep.subr.bf16.mxu0 0
    %238 = vmatpush1.bf16.msra.mxu0 %v221
    %239 = vmatprep.subr.bf16.mxu0 0
    %240 = vmatpush1.bf16.msra.mxu0 %v222
    %241 = vmatprep.subr.bf16.mxu0 0
    %242 = vmatpush1.bf16.msra.mxu0 %v223
    %243 = vmatprep.subr.bf16.mxu0 0
    %244 = vmatpush1.bf16.msra.mxu0 %v224
    %245 = vmatprep.subr.bf16.mxu0 0
    %246 = vmatpush1.bf16.msra.mxu0 %v225
    %247 = vmatprep.subr.bf16.mxu0 0
    %248 = vmatpush1.bf16.msra.mxu0 %v226
    %249 = vmatprep.subr.bf16.mxu0 0
    %250 = vmatpush1.bf16.msra.mxu0 %v227
    %251 = vmatprep.subr.bf16.mxu0 0
    %252 = vmatpush1.bf16.msra.mxu0 %v228
    %253 = vmatprep.subr.bf16.mxu0 0
    %254 = vmatpush1.bf16.msra.mxu0 0
    %255 = vmatprep.subr.bf16.mxu0 0
    %256 = vmatpush1.bf16.msra.mxu0 0
    %257 = vmatprep.subr.bf16.mxu0 0
    %258 = vmatpush1.bf16.msra.mxu0 0
    %259 = vmatprep.subr.bf16.mxu0 0
    %260 = vmatpush1.bf16.msra.mxu0 0
    %261 = vmatprep.subr.bf16.mxu0 0
    %262 = vmatpush1.bf16.msra.mxu0 0
    %263 = vmatprep.subr.bf16.mxu0 0
    %264 = vmatpush1.bf16.msra.mxu0 0
    %265 = vmatprep.subr.bf16.mxu0 0
    %266 = vmatpush1.bf16.msra.mxu0 0
    %267 = vmatprep.subr.bf16.mxu0 0
    %268 = vmatpush1.bf16.msra.mxu0 0
    %269 = vmatprep.mubr.bf16.mxu0 0
    %270 = vmatmul.mubr.bf16.gmra.mrb[0].mxu0 %v165
    %v271 = vpop.f32.mrb[0].mxu0
    %v272 = vadd.f32 %v188, %v271
    %v273 = vpop.f32.mrb[0].mxu0
    %v274 = vpop.f32.mrb[0].mxu0
    %v275 = vadd.f32 %v188, %v274
    %v276 = vpop.f32.mrb[0].mxu0
    %277 = vdwg.mxu0
    %278 = vadd.xlane.f32.xlu0 %v272
    %v279 = vpop.xlane.xlu0 %278
    %280 = vadd.xlane.f32.xlu0 %v275
    %v281 = vpop.xlane.xlu0 %280
    %v282 = vmul.f32 %v272, %v272
    %v283 = vmul.f32 %v275, %v275
    %284 = vadd.xlane.f32.xlu0 %v282
    %v285 = vpop.xlane.xlu0 %284
    %286 = vadd.xlane.f32.xlu0 %v283
    %v287 = vpop.xlane.xlu0 %286
    %v288 = vmul.f32 %v279, 0.03125
    %v289 = vmul.f32 %v281, 0.03125
    %v290 = vmul.f32 %v285, 0.03125
    %v291 = vmul.f32 %v287, 0.03125
    %v292 = vmul.f32 %v288, %v288
    %v293 = vmul.f32 %v289, %v289
    %v294 = vsub.f32 %v290, %v292
    %v295 = vsub.f32 %v291, %v293
    %v296 = vmax.f32 %v294, 0.0
    %v297 = vmax.f32 %v295, 0.0
    %v298 = vsub.f32 %v272, %v288
    %v299 = vsub.f32 %v275, %v289
    %v300 = vadd.f32 %v296, 1e-05
    %v301 = vadd.f32 %v297, 1e-05
    %v302 = vrsqrt.pop %v300
    %v303 = vrsqrt.pop %v301
    %v304 = vmul.f32 %v298, %v302
    %v305 = vmul.f32 %v299, %v303
    %v306 = vlaneseq
    %v307 = vshrl.u32 %v306, 7
    %v308 = vsub.s32 1, %v307
    %v309 = vrot.slane %v184, %v308
    %v310 = vmul.f32 %v304, %v309
    %v311 = vmul.f32 %v305, %v309
    %v312 = vlaneseq
    %v313 = vshrl.u32 %v312, 7
    %v314 = vsub.s32 2, %v313
    %v315 = vrot.slane %v184, %v314
    %v316 = vadd.f32 %v310, %v315
    %v317 = vadd.f32 %v311, %v315
    %v318 = vmax.f32 %v316, 0.0
    %v319 = vmax.f32 %v317, 0.0
    %v320 = vpack.c.bf16 %v319, %v318
    %v321 = vld [vmem:[#allocation5] sm:$0xf]
    %v322 = vld [vmem:[#allocation5 + $0x4] sm:$0xf]
    %v323 = vld [vmem:[#allocation5 + $0x8] sm:$0xf]
    %v324 = vld [vmem:[#allocation5 + $0xc] sm:$0xf]
    %v325 = vld [vmem:[#allocation5 + $0x10] sm:$0xf]
    %v326 = vld [vmem:[#allocation5 + $0x14] sm:$0xf]
    %v327 = vld [vmem:[#allocation5 + $0x18] sm:$0xf]
    %v328 = vld [vmem:[#allocation5 + $0x1c] sm:$0xf]
    %v329 = vld [vmem:[#allocation5 + $0x20] sm:$0xf]
    %v330 = vld [vmem:[#allocation5 + $0x24] sm:$0xf]
    %v331 = vld [vmem:[#allocation5 + $0x28] sm:$0xf]
    %v332 = vld [vmem:[#allocation5 + $0x2c] sm:$0xf]
    %v333 = vld [vmem:[#allocation5 + $0x30] sm:$0xf]
    %v334 = vld [vmem:[#allocation5 + $0x34] sm:$0xf]
    %v335 = vld [vmem:[#allocation5 + $0x38] sm:$0xf]
    %v336 = vld [vmem:[#allocation5 + $0x3c] sm:$0xf]
    %v337 = vld [vmem:[%s4] sm:$0x1]
    %v339 = vlaneseq
    %v340 = vshrl.u32 %v339, 7
    %v341 = vsub.s32 0, %v340
    %v342 = vrot.slane %v337, %v341
    %v360 = vunpack.c.l.b16 %v321
    %v361 = vunpack.c.l.b16 %v322
    %v362 = vunpack.c.l.b16 %v323
    %v363 = vunpack.c.l.b16 %v324
    %v364 = vunpack.c.l.b16 %v325
    %v365 = vunpack.c.l.b16 %v326
    %v366 = vunpack.c.l.b16 %v327
    %v367 = vunpack.c.l.b16 %v328
    %v368 = vunpack.c.l.b16 %v329
    %v369 = vunpack.c.l.b16 %v330
    %v370 = vunpack.c.l.b16 %v331
    %v371 = vunpack.c.l.b16 %v332
    %v372 = vunpack.c.l.b16 %v333
    %v373 = vunpack.c.l.b16 %v334
    %v374 = vunpack.c.l.b16 %v335
    %v375 = vunpack.c.l.b16 %v336
    %v376 = vpack.c.b16 %v361, %v360
    %v377 = vpack.c.b16 %v363, %v362
    %v378 = vpack.c.b16 %v365, %v364
    %v379 = vpack.c.b16 %v367, %v366
    %v380 = vpack.c.b16 %v369, %v368
    %v381 = vpack.c.b16 %v371, %v370
    %v382 = vpack.c.b16 %v373, %v372
    %v383 = vpack.c.b16 %v375, %v374
    %392 = vmatprep.subr.bf16.mxu0 0
    %393 = vmatpush1.bf16.msra.mxu0 %v376
    %394 = vmatprep.subr.bf16.mxu0 0
    %395 = vmatpush1.bf16.msra.mxu0 %v377
    %396 = vmatprep.subr.bf16.mxu0 0
    %397 = vmatpush1.bf16.msra.mxu0 %v378
    %398 = vmatprep.subr.bf16.mxu0 0
    %399 = vmatpush1.bf16.msra.mxu0 %v379
    %400 = vmatprep.subr.bf16.mxu0 0
    %401 = vmatpush1.bf16.msra.mxu0 %v380
    %402 = vmatprep.subr.bf16.mxu0 0
    %403 = vmatpush1.bf16.msra.mxu0 %v381
    %404 = vmatprep.subr.bf16.mxu0 0
    %405 = vmatpush1.bf16.msra.mxu0 %v382
    %406 = vmatprep.subr.bf16.mxu0 0
    %407 = vmatpush1.bf16.msra.mxu0 %v383
    %408 = vmatprep.subr.bf16.mxu0 0
    %409 = vmatpush1.bf16.msra.mxu0 0
    %410 = vmatprep.subr.bf16.mxu0 0
    %411 = vmatpush1.bf16.msra.mxu0 0
    %412 = vmatprep.subr.bf16.mxu0 0
    %413 = vmatpush1.bf16.msra.mxu0 0
    %414 = vmatprep.subr.bf16.mxu0 0
    %415 = vmatpush1.bf16.msra.mxu0 0
    %416 = vmatprep.subr.bf16.mxu0 0
    %417 = vmatpush1.bf16.msra.mxu0 0
    %418 = vmatprep.subr.bf16.mxu0 0
    %419 = vmatpush1.bf16.msra.mxu0 0
    %420 = vmatprep.subr.bf16.mxu0 0
    %421 = vmatpush1.bf16.msra.mxu0 0
    %422 = vmatprep.subr.bf16.mxu0 0
    %423 = vmatpush1.bf16.msra.mxu0 0
    %424 = vmatprep.mubr.bf16.mxu0 0
    %425 = vmatmul.mubr.bf16.gmra.mrb[0].mxu0 %v320
    %v426 = vpop.f32.mrb[0].mxu0
    %v427 = vadd.f32 %v342, %v426
    %v428 = vpop.f32.mrb[0].mxu0
    %v429 = vpop.f32.mrb[0].mxu0
    %v430 = vadd.f32 %v342, %v429
    %v431 = vpop.f32.mrb[0].mxu0
    %432 = vdwg.mxu0
    %v433 = vpack.c.bf16 %v430, %v427
    %v435 = vunpack.c.l.b16 %v433
    %v436 = vunpack.c.h.b16 %v433
    %v437 = vpack.c.b16 %v435, %v435
    %v438 = vpack.c.b16 %v436, %v436
    %441 = vst [vmem:[#allocation7] sm:$0xf] %v437
    %442 = vst [vmem:[#allocation7 + $0x4] sm:$0xf] %v438
    // Predicated region
    $region30: #{tpu_custom_call.1} parent=1 // pred_check
      _
    $region31: #{tpu_custom_call.1} parent=1 // pred_check_branch
      %444 = sbr.rel (0) target = $region33
    $region32: #{tpu_custom_call.1} parent=1 // pred_region
      %s446 = ssub.s32 128, 128
      %447 = vsyncadd [#allocation4], %s446
      %s448 = sshll.u32 [#allocation7], 4
      %s449 = int_to_ptr.vmem [resolvable:$true] %s448
      %454 = dma.vmem_to_hbm [thread:$0]  %s449, 128, %s5, [#allocation4], 64, 64, 4
    $region33: #{tpu_custom_call.1} parent=1 // pred_fallthru
      _
    // Predicated region
    $region34: #{tpu_custom_call.1} parent=1 // pred_check
      _
    $region35: #{tpu_custom_call.1} parent=1 // pred_check_branch
      %456 = sbr.rel (0) target = $region37
    $region36: #{tpu_custom_call.1} parent=1 // pred_region
      %457 = dma.done [#allocation4], 128
    $region37: #{tpu_custom_call.1} parent=1 // pred_fallthru
      _
    %458 = vsyncpa [#allocation3], 1
    %459 = vsyncpa [#allocation6], 1
    %460 = vsyncpa [#allocation4], 1

</llo_original>
